<compile_context>
chip_gen: v7x
topology: tpu7x:2x2x1
jax: 0.10.0
libtpu: 0.0.40
codegen_flags: <defaults>
</compile_context>

<pallas_src>
import functools

import jax
import jax.numpy as jnp
from jax.experimental import pallas as pl
from jax.experimental.pallas import tpu as pltpu


def _focal_partial_kernel(x_ref, y_ref, sum_ref, cnt_ref, sum_sc, cnt_sc,
                          *, ignore_index, hw, compute_dtype):
    po = pl.program_id(1)          # pixel shard (parallel)
    pi = pl.program_id(2)          # pixel tile within shard (arbitrary)
    n_inner = pl.num_programs(2)

    # Reset the per-shard lane/sublane-wide accumulators on the first tile.
    @pl.when(pi == 0)
    def _():
        sum_sc[...] = jnp.zeros_like(sum_sc)
        cnt_sc[...] = jnp.zeros_like(cnt_sc)

    # (C, tq, 128): classes lead, pixels fill sublanes AND lanes.
    # bf16 inputs keep the elementwise chain in bf16 (no-op astype);
    # everything that accumulates is cast to f32 below.
    x = x_ref[...].astype(compute_dtype)
    y = y_ref[...]                                   # (tq, 128) int32

    # Per-pixel log-softmax cross entropy; class reductions are over the
    # leading vreg-plane axis (plain VPU adds/maxes).
    col_max = jnp.max(x, axis=0, keepdims=True)      # (1, tq, 128)
    shifted = x - col_max                            # (C, tq, 128), <= 0
    sumexp = jnp.sum(jnp.exp(shifted).astype(jnp.float32), axis=0)   # f32 accum
    lse = jnp.log(sumexp)                            # (tq, 128) f32

    class_iota = jax.lax.broadcasted_iota(jnp.int32, x.shape, 0)
    onehot = class_iota == y[None]                   # (C, tq, 128)
    tgt = jnp.sum(jnp.where(onehot, shifted, 0).astype(jnp.float32), axis=0)
    ce = lse - tgt                                   # (tq, 128) f32

    # Validity mask: not ignore_index AND pixel actually inside the image
    # (handles the ragged last tile / last-row garbage without any padding).
    tq = y.shape[0]
    row_iota = jax.lax.broadcasted_iota(jnp.int32, y.shape, 0)
    lane_iota = jax.lax.broadcasted_iota(jnp.int32, y.shape, 1)
    tile_idx = po * n_inner + pi
    pix = (tile_idx * tq + row_iota) * 128 + lane_iota
    valid = (y != ignore_index) & (pix < hw)

    # Select (not multiply) so NaN/Inf garbage in masked columns never leaks.
    sum_sc[...] += jnp.where(valid, ce, 0.0)
    cnt_sc[...] += valid.astype(jnp.float32)

    # One cross-lane/sublane reduction per shard, on the last tile only.
    @pl.when(pi == n_inner - 1)
    def _():
        sum_ref[...] = jnp.sum(sum_sc[...], keepdims=True)   # (1, 1)
        cnt_ref[...] = jnp.sum(cnt_sc[...], keepdims=True)   # (1, 1)


def focal_loss(preds, labels, *, alpha=0.5, gamma=2, ignore_index=255,
               vmem_budget_bytes=24 << 20):
    """preds: (N, C, H, W) float; labels: (N, H, W) int. Returns scalar f32."""
    N, C, H, W = preds.shape
    HW = H * W
    HW128 = pl.cdiv(HW, 128) * 128
    R = HW128 // 128                     # pixel rows of 128

    x = preds.reshape(N, C, HW)          # zero-copy view, native dtype
    y = labels.reshape(N, HW).astype(jnp.int32)
    if HW128 != HW:
        # Only the <=127-pixel remainder needed for the (R, 128) view; typical
        # segmentation resolutions take the zero-copy path below.
        # TODO(synk): flat-layout fallback kernel to avoid this copy entirely.
        x = jnp.pad(x, ((0, 0), (0, 0), (0, HW128 - HW)))
        y = jnp.pad(y, ((0, 0), (0, HW128 - HW)), constant_values=ignore_index)
    x = x.reshape(N, C, R, 128)
    y = y.reshape(N, R, 128)

    # Tile rows from a VMEM budget: double-buffered logits + labels blocks
    # plus the two f32 scratch accumulators, per row of 128 pixels.
    itemsize = jnp.dtype(preds.dtype).itemsize
    per_row = 128 * (2 * C * itemsize + 2 * 4 + 2 * 4)
    tq = vmem_budget_bytes // per_row
    if tq >= R:
        tq = R                            # full dim satisfies the (8,128) rule
    else:
        tq = max(8, (tq // 8) * 8)        # sublane block dim: multiple of 8
    # TODO(synk): stream the class axis (online LSE) for very large C instead
    # of holding the whole (C, tq, 128) chain live.

    num_tiles = pl.cdiv(R, tq)
    p_out = 2 if (num_tiles % 2 == 0) else 1   # extra parallel axis for v7x
    p_in = num_tiles // p_out

    # bf16 elementwise chain on bf16 inputs (v6e/v7x pack 2/lane; on v5e this
    # is merely neutral). Accumulations stay f32 inside the kernel.
    compute_dtype = jnp.bfloat16 if preds.dtype == jnp.bfloat16 else jnp.float32

    kernel = functools.partial(_focal_partial_kernel,
                               ignore_index=ignore_index, hw=HW,
                               compute_dtype=compute_dtype)

    vmem_limit = max(32 << 20, tq * per_row + (2 << 20))

    sums, cnts = pl.pallas_call(
        kernel,
        out_shape=(jax.ShapeDtypeStruct((N, p_out, 1, 1), jnp.float32),
                   jax.ShapeDtypeStruct((N, p_out, 1, 1), jnp.float32)),
        grid_spec=pltpu.PrefetchScalarGridSpec(
            num_scalar_prefetch=0,
            grid=(N, p_out, p_in),
            in_specs=[
                pl.BlockSpec((None, C, tq, 128),
                             lambda n, po, pi: (n, 0, po * p_in + pi, 0)),
                pl.BlockSpec((None, tq, 128),
                             lambda n, po, pi: (n, po * p_in + pi, 0)),
            ],
            out_specs=[
                pl.BlockSpec((None, None, 1, 1),
                             lambda n, po, pi: (n, po, 0, 0)),
                pl.BlockSpec((None, None, 1, 1),
                             lambda n, po, pi: (n, po, 0, 0)),
            ],
            scratch_shapes=[
                pltpu.VMEM((tq, 128), jnp.float32),   # CE partial sums
                pltpu.VMEM((tq, 128), jnp.float32),   # valid-pixel counts
            ],
        ),
        compiler_params=pltpu.CompilerParams(
            dimension_semantics=("parallel", "parallel", "arbitrary"),
            vmem_limit_bytes=vmem_limit),
    )(x, y)

    # Tiny scalar combine + focal formula in the wrapper.
    # Note: all-ignored input -> count 0 -> NaN, matching
    # nn.CrossEntropyLoss(reduction='mean').
    ce_mean = jnp.sum(sums) / jnp.sum(cnts)
    logpt = -ce_mean
    pt = jnp.exp(logpt)
    return -((1.0 - pt) ** gamma) * alpha * logpt


def _focal_loss_ref(preds, labels, *, alpha=0.5, gamma=2, ignore_index=255):
    N, C, H, W = preds.shape
    x = jnp.transpose(preds, (0, 2, 3, 1)).reshape(-1, C).astype(jnp.float32)
    y = labels.reshape(-1).astype(jnp.int32)
    logp = jax.nn.log_softmax(x, axis=-1)
    valid = y != ignore_index
    y_safe = jnp.where(valid, y, 0)
    ce = -jnp.take_along_axis(logp, y_safe[:, None], axis=-1)[:, 0]
    ce_mean = jnp.sum(jnp.where(valid, ce, 0.0)) / jnp.sum(valid)
    logpt = -ce_mean
    pt = jnp.exp(logpt)
    return -((1.0 - pt) ** gamma) * alpha * logpt


if __name__ == "__main__":
    key = jax.random.PRNGKey(0)
    k1, k2, k3 = jax.random.split(key, 3)

    N, C, H, W = 2, 4, 16, 16
    preds = jax.random.normal(k1, (N, C, H, W), dtype=jnp.float32)
    labels = jax.random.randint(k2, (N, H, W), 0, C, dtype=jnp.int32)
    # sprinkle some ignore_index pixels to exercise the mask
    ignore_mask = jax.random.bernoulli(k3, 0.1, (N, H, W))
    labels = jnp.where(ignore_mask, 255, labels)

    loss = jax.block_until_ready(focal_loss(preds, labels))
    ref = jax.block_until_ready(_focal_loss_ref(preds, labels))
    assert jnp.allclose(loss, ref, rtol=1e-5, atol=1e-6), (loss, ref)
    print("KERNEL_OK")
</pallas_src>

<mosaic_0001>
module attributes {stable_mosaic.version = 11 : i64} {
  func.func @_focal_partial_kernel(%arg0: i32, %arg1: i32, %arg2: i32, %arg3: memref<1x4x2x128xf32, #tpu.memory_space<vmem>>, %arg4: memref<1x2x128xi32, #tpu.memory_space<vmem>>, %arg5: memref<1x1x1x1xf32, #tpu.memory_space<vmem>>, %arg6: memref<1x1x1x1xf32, #tpu.memory_space<vmem>>, %arg7: memref<2x128xf32, #tpu.memory_space<vmem>>, %arg8: memref<2x128xf32, #tpu.memory_space<vmem>>) attributes {dimension_semantics = [#tpu.dimension_semantics<parallel>, #tpu.dimension_semantics<parallel>, #tpu.dimension_semantics<arbitrary>], iteration_bounds = array<i64: 2, 1, 1>, scalar_prefetch = 0 : i64, scratch_operands = 2 : i64, tpu.core_type = #tpu.core_type<tc>, window_params = [{transform_indices = @transform_0, window_bounds = array<i64: 1, 4, 2, 128>}, {transform_indices = @transform_1, window_bounds = array<i64: 1, 2, 128>}, {transform_indices = @transform_2, window_bounds = array<i64: 1, 1, 1, 1>}, {transform_indices = @transform_3, window_bounds = array<i64: 1, 1, 1, 1>}]} {
    %c0_i32 = arith.constant 0 : i32
    %0 = arith.cmpi eq, %arg2, %c0_i32 : i32
    %1 = arith.extui %0 : i1 to i32
    %c0_i32_0 = arith.constant 0 : i32
    %2 = arith.cmpi ne, %1, %c0_i32_0 : i32
    scf.if %2 {
      %cst_21 = arith.constant 0.000000e+00 : f32
      %51 = vector.broadcast %cst_21 : f32 to vector<2x128xf32>
      %c0_22 = arith.constant 0 : index
      %c0_23 = arith.constant 0 : index
      %52 = vector.load %arg7[%c0_22, %c0_23] : memref<2x128xf32, #tpu.memory_space<vmem>>, vector<2x128xf32>
      tpu.vector_store %arg7[%c0_22, %c0_23], %51 {strides = array<i32>} : memref<2x128xf32, #tpu.memory_space<vmem>>, vector<2x128xf32>,
      %cst_24 = arith.constant 0.000000e+00 : f32
      %53 = vector.broadcast %cst_24 : f32 to vector<2x128xf32>
      %c0_25 = arith.constant 0 : index
      %c0_26 = arith.constant 0 : index
      %54 = vector.load %arg8[%c0_25, %c0_26] : memref<2x128xf32, #tpu.memory_space<vmem>>, vector<2x128xf32>
      tpu.vector_store %arg8[%c0_25, %c0_26], %53 {strides = array<i32>} : memref<2x128xf32, #tpu.memory_space<vmem>>, vector<2x128xf32>,
    } else {
    }
    %c0 = arith.constant 0 : index
    %c0_1 = arith.constant 0 : index
    %c0_2 = arith.constant 0 : index
    %c0_3 = arith.constant 0 : index
    %3 = vector.load %arg3[%c0, %c0_1, %c0_2, %c0_3] : memref<1x4x2x128xf32, #tpu.memory_space<vmem>>, vector<1x4x2x128xf32>
    %4 = vector.shape_cast %3 : vector<1x4x2x128xf32> to vector<4x2x128xf32>
    %c0_4 = arith.constant 0 : index
    %c0_5 = arith.constant 0 : index
    %c0_6 = arith.constant 0 : index
    %5 = vector.load %arg4[%c0_4, %c0_5, %c0_6] : memref<1x2x128xi32, #tpu.memory_space<vmem>>, vector<1x2x128xi32>
    %6 = vector.shape_cast %5 : vector<1x2x128xi32> to vector<2x128xi32>
    %cst = arith.constant dense<0xFF800000> : vector<2x128xf32>
    %7 = vector.multi_reduction <maximumf>, %4, %cst [0] : vector<4x2x128xf32> to vector<2x128xf32>
    %8 = vector.shape_cast %7 : vector<2x128xf32> to vector<1x2x128xf32>
    %9 = vector.broadcast %8 : vector<1x2x128xf32> to vector<4x2x128xf32>
    %10 = arith.subf %4, %9 : vector<4x2x128xf32>
    %11 = math.exp %10 : vector<4x2x128xf32>
    %cst_7 = arith.constant dense<0.000000e+00> : vector<2x128xf32>
    %12 = vector.multi_reduction <add>, %11, %cst_7 [0] : vector<4x2x128xf32> to vector<2x128xf32>
    %13 = math.log %12 : vector<2x128xf32>
    %14 = tpu.iota {dimensions = array<i32: 0>} : vector<4x2x128xi32>
    %15 = vector.shape_cast %6 : vector<2x128xi32> to vector<1x2x128xi32>
    %16 = vector.broadcast %15 : vector<1x2x128xi32> to vector<4x2x128xi32>
    %17 = arith.cmpi eq, %14, %16 : vector<4x2x128xi32>
    %c0_i32_8 = arith.constant 0 : i32
    %18 = arith.sitofp %c0_i32_8 : i32 to f32
    %19 = vector.broadcast %18 : f32 to vector<4x2x128xf32>
    %20 = arith.select %17, %10, %19 : vector<4x2x128xi1>, vector<4x2x128xf32>
    %cst_9 = arith.constant dense<0.000000e+00> : vector<2x128xf32>
    %21 = vector.multi_reduction <add>, %20, %cst_9 [0] : vector<4x2x128xf32> to vector<2x128xf32>
    %22 = arith.subf %13, %21 : vector<2x128xf32>
    %23 = tpu.iota {dimensions = array<i32: 0>} : vector<2x128xi32>
    %24 = tpu.iota {dimensions = array<i32: 1>} : vector<2x128xi32>
    %c1_i32 = arith.constant 1 : i32
    %25 = arith.muli %arg1, %c1_i32 : i32
    %26 = arith.addi %25, %arg2 : i32
    %c2_i32 = arith.constant 2 : i32
    %27 = arith.muli %26, %c2_i32 : i32
    %28 = vector.broadcast %27 : i32 to vector<2x128xi32>
    %29 = arith.addi %28, %23 : vector<2x128xi32>
    %c128_i32 = arith.constant 128 : i32
    %30 = vector.broadcast %c128_i32 : i32 to vector<2x128xi32>
    %31 = arith.muli %29, %30 : vector<2x128xi32>
    %32 = arith.addi %31, %24 : vector<2x128xi32>
    %c255_i32 = arith.constant 255 : i32
    %33 = vector.broadcast %c255_i32 : i32 to vector<2x128xi32>
    %34 = arith.cmpi ne, %6, %33 : vector<2x128xi32>
    %c256_i32 = arith.constant 256 : i32
    %35 = vector.broadcast %c256_i32 : i32 to vector<2x128xi32>
    %36 = arith.cmpi slt, %32, %35 : vector<2x128xi32>
    %37 = arith.andi %34, %36 : vector<2x128xi1>
    %c0_10 = arith.constant 0 : index
    %c0_11 = arith.constant 0 : index
    %38 = vector.load %arg7[%c0_10, %c0_11] : memref<2x128xf32, #tpu.memory_space<vmem>>, vector<2x128xf32>
    %cst_12 = arith.constant 0.000000e+00 : f32
    %39 = vector.broadcast %cst_12 : f32 to vector<2x128xf32>
    %40 = arith.select %37, %22, %39 : vector<2x128xi1>, vector<2x128xf32>
    %41 = arith.addf %38, %40 : vector<2x128xf32>
    %c0_13 = arith.constant 0 : index
    %c0_14 = arith.constant 0 : index
    %42 = vector.load %arg7[%c0_13, %c0_14] : memref<2x128xf32, #tpu.memory_space<vmem>>, vector<2x128xf32>
    tpu.vector_store %arg7[%c0_13, %c0_14], %41 {strides = array<i32>} : memref<2x128xf32, #tpu.memory_space<vmem>>, vector<2x128xf32>,
    %c0_15 = arith.constant 0 : index
    %c0_16 = arith.constant 0 : index
    %43 = vector.load %arg8[%c0_15, %c0_16] : memref<2x128xf32, #tpu.memory_space<vmem>>, vector<2x128xf32>
    %44 = arith.extui %37 : vector<2x128xi1> to vector<2x128xi32>
    %45 = arith.sitofp %44 : vector<2x128xi32> to vector<2x128xf32>
    %46 = arith.addf %43, %45 : vector<2x128xf32>
    %c0_17 = arith.constant 0 : index
    %c0_18 = arith.constant 0 : index
    %47 = vector.load %arg8[%c0_17, %c0_18] : memref<2x128xf32, #tpu.memory_space<vmem>>, vector<2x128xf32>
    tpu.vector_store %arg8[%c0_17, %c0_18], %46 {strides = array<i32>} : memref<2x128xf32, #tpu.memory_space<vmem>>, vector<2x128xf32>,
    %c0_i32_19 = arith.constant 0 : i32
    %48 = arith.cmpi eq, %arg2, %c0_i32_19 : i32
    %49 = arith.extui %48 : i1 to i32
    %c0_i32_20 = arith.constant 0 : i32
    %50 = arith.cmpi ne, %49, %c0_i32_20 : i32
    scf.if %50 {
      %c0_21 = arith.constant 0 : index
      %c0_22 = arith.constant 0 : index
      %51 = vector.load %arg7[%c0_21, %c0_22] : memref<2x128xf32, #tpu.memory_space<vmem>>, vector<2x128xf32>
      %52 = vector.shape_cast %51 : vector<2x128xf32> to vector<1x2x128xf32>
      %cst_23 = arith.constant dense<0.000000e+00> : vector<1xf32>
      %53 = vector.multi_reduction <add>, %52, %cst_23 [1, 2] : vector<1x2x128xf32> to vector<1xf32>
      %54 = vector.shape_cast %53 : vector<1xf32> to vector<1x1x1xf32>
      %55 = vector.extract %54[0, 0, 0] : f32 from vector<1x1x1xf32>
      %56 = vector.broadcast %55 : f32 to vector<1x1xf32>
      %c0_24 = arith.constant 0 : index
      %c0_25 = arith.constant 0 : index
      %c0_26 = arith.constant 0 : index
      %c0_27 = arith.constant 0 : index
      %57 = vector.load %arg5[%c0_24, %c0_25, %c0_26, %c0_27] : memref<1x1x1x1xf32, #tpu.memory_space<vmem>>, vector<1x1x1x1xf32>
      %58 = vector.shape_cast %57 : vector<1x1x1x1xf32> to vector<1x1xf32>
      %59 = vector.shape_cast %56 : vector<1x1xf32> to vector<1x1x1x1xf32>
      tpu.vector_store %arg5[%c0_24, %c0_25, %c0_26, %c0_27], %59 {strides = array<i32>} : memref<1x1x1x1xf32, #tpu.memory_space<vmem>>, vector<1x1x1x1xf32>,
      %c0_28 = arith.constant 0 : index
      %c0_29 = arith.constant 0 : index
      %60 = vector.load %arg8[%c0_28, %c0_29] : memref<2x128xf32, #tpu.memory_space<vmem>>, vector<2x128xf32>
      %61 = vector.shape_cast %60 : vector<2x128xf32> to vector<1x2x128xf32>
      %cst_30 = arith.constant dense<0.000000e+00> : vector<1xf32>
      %62 = vector.multi_reduction <add>, %61, %cst_30 [1, 2] : vector<1x2x128xf32> to vector<1xf32>
      %63 = vector.shape_cast %62 : vector<1xf32> to vector<1x1x1xf32>
      %64 = vector.extract %63[0, 0, 0] : f32 from vector<1x1x1xf32>
      %65 = vector.broadcast %64 : f32 to vector<1x1xf32>
      %c0_31 = arith.constant 0 : index
      %c0_32 = arith.constant 0 : index
      %c0_33 = arith.constant 0 : index
      %c0_34 = arith.constant 0 : index
      %66 = vector.load %arg6[%c0_31, %c0_32, %c0_33, %c0_34] : memref<1x1x1x1xf32, #tpu.memory_space<vmem>>, vector<1x1x1x1xf32>
      %67 = vector.shape_cast %66 : vector<1x1x1x1xf32> to vector<1x1xf32>
      %68 = vector.shape_cast %65 : vector<1x1xf32> to vector<1x1x1x1xf32>
      tpu.vector_store %arg6[%c0_31, %c0_32, %c0_33, %c0_34], %68 {strides = array<i32>} : memref<1x1x1x1xf32, #tpu.memory_space<vmem>>, vector<1x1x1x1xf32>,
    } else {
    }
    return
  }
  func.func @transform_0(%arg0: i32, %arg1: i32, %arg2: i32) -> (i32, i32, i32, i32) {
    %c1_i32 = arith.constant 1 : i32
    %0 = arith.muli %arg1, %c1_i32 : i32
    %1 = arith.addi %0, %arg2 : i32
    %c0_i32 = arith.constant 0 : i32
    %c0_i32_0 = arith.constant 0 : i32
    %c0_i32_1 = arith.constant 0 : i32
    return %arg0, %c0_i32, %1, %c0_i32_0 : i32, i32, i32, i32
  }
  func.func @transform_1(%arg0: i32, %arg1: i32, %arg2: i32) -> (i32, i32, i32) {
    %c1_i32 = arith.constant 1 : i32
    %0 = arith.muli %arg1, %c1_i32 : i32
    %1 = arith.addi %0, %arg2 : i32
    %c0_i32 = arith.constant 0 : i32
    %c0_i32_0 = arith.constant 0 : i32
    return %arg0, %1, %c0_i32 : i32, i32, i32
  }
  func.func @transform_2(%arg0: i32, %arg1: i32, %arg2: i32) -> (i32, i32, i32, i32) {
    %c0_i32 = arith.constant 0 : i32
    %c0_i32_0 = arith.constant 0 : i32
    %c0_i32_1 = arith.constant 0 : i32
    return %arg0, %arg1, %c0_i32, %c0_i32_0 : i32, i32, i32, i32
  }
  func.func @transform_3(%arg0: i32, %arg1: i32, %arg2: i32) -> (i32, i32, i32, i32) {
    %c0_i32 = arith.constant 0 : i32
    %c0_i32_0 = arith.constant 0 : i32
    %c0_i32_1 = arith.constant 0 : i32
    return %arg0, %arg1, %c0_i32, %c0_i32_0 : i32, i32, i32, i32
  }
}

</mosaic_0001>

<llo_original>
// kernel: tpu_custom_call.1
$region0: #{tpu_custom_call.1}
  #allocation0 [shape = 'u32[]', space=smem, size = 0x4, offset = 0x4, fixed_abs, tag = 'smem constant byte address 0x4 - core index']
  #allocation1 [shape = 'u32[144,128]{1,0:T(1,128)}', space=vmem, size = 0x12000, scoped, tag = 'internal scratch']
  #allocation2 [shape = 'f32[2,128]{1,0:T(2,128)}', space=vmem, size = 0x400, scoped, tag = 'scratch operand']
  #allocation3 [shape = 'f32[2,128]{1,0:T(2,128)}', space=vmem, size = 0x400, scoped, tag = 'scratch operand']
  %s0 = inlined_call_operand.hbm [shape: f32[2,4,2,128], index: 0, kind: input, shape index: {}]
  %s1 = inlined_call_operand.hbm [shape: s32[2,2,128], index: 1, kind: input, shape index: {}]
  %s2 = inlined_call_operand.vmem [shape: f32[2,1,1,1], index: 2, kind: output, shape index: {0}]
  %s3 = inlined_call_operand.vmem [shape: f32[2,1,1,1], index: 3, kind: output, shape index: {1}]
  %4 = xla_tuple %s2, %s3
  %s5 = sld [smem:[#allocation0]]
  $region65: #{tpu_custom_call.1} parent=0
    _
  %s7 = ssub.s32 1, %s5
  %s8 = scalar_select 0, %s7, %s5
  $region1: #{tpu_custom_call.1} parent=0
    #allocation4 [shape = 'u8[8192]{0}', space=vmem, size = 0x2000, scoped, tag = 'input window, operand 0']
    #allocation5 [shape = 's32[2]{0}', space=sflag, size = 0x8, scoped, tag = 'scoped memory for tpu_custom_call.1']
    #allocation6 [shape = 'u8[2048]{0}', space=vmem, size = 0x800, scoped, tag = 'input window, operand 1']
    #allocation7 [shape = 's32[2]{0}', space=sflag, size = 0x8, scoped, tag = 'scoped memory for tpu_custom_call.1']
    %9 = vsyncpa [#allocation5], 0
    %s10 = scalar_lea.sflag [#allocation5], 1
    %11 = vsyncpa %s10, 0
    %12 = vsyncpa [#allocation7], 0
    %s13 = scalar_lea.sflag [#allocation7], 1
    %14 = vsyncpa %s13, 0
    loop: start=0, step=1, limit=4
    $region2: #{tpu_custom_call.1} parent=1 // loop_pre_header
      _
    $region3: #{tpu_custom_call.1} parent=1 // loop_header
      %s16 = sphi 0, %s20
      %p17 = scmp.ge.s32.totalorder %s16, 4
      %s23 = sphi 0, %s42
      %s24 = sphi 0, %s38
      %s25 = sphi 0, %s34
      %s26 = sphi 0, %s23
      %s27 = sphi 0, %s24
      %s28 = sphi 0, %s25
      %s29 = sphi 0, %s26
      %s30 = sphi 0, %s27
      %s31 = sphi 0, %s28
      %s49 = sphi 0, %s51
      %s52 = sphi 0, %s49
      %s53 = sphi 0, %s52
      %s69 = sphi 0, %s53
      %s79 = sphi 0, %s81
      %s82 = sphi 0, %s79
      %s83 = sphi 0, %s82
      %s99 = sphi 0, %s83
      %s107 = sphi 0, %s109
      %s110 = sphi 0, %s107
      %s111 = sphi 0, %s110
      %s127 = sphi 0, %s111
      %s135 = sphi 0, %s137
      %s138 = sphi 0, %s135
      %s139 = sphi 0, %s138
      %s155 = sphi 0, %s139
    $region4: #{tpu_custom_call.1} parent=1 // loop_header_branch
      %19 = sbr.rel (%p17) target = $region8
    $region5: #{tpu_custom_call.1} parent=1 // loop_body
      %s21 = ssub.s32 %s16, 1
      %s22 = ssub.s32 %s16, 2
      %s32 = sadd.s32 1, %s25
      %p33 = scmp.ge.s32.totalorder %s32, 1
      %s34 = scalar_select %p33, 0, %s32
      %s35 = sadd.s32 1, %s24
      %s36 = scalar_select %p33, %s35, %s24
      %p37 = scmp.ge.s32.totalorder %s36, 1
      %s38 = scalar_select %p37, 0, %s36
      %s39 = sadd.s32 1, %s23
      %s40 = scalar_select %p37, %s39, %s23
      %p41 = scmp.ge.s32.totalorder %s40, 2
      %s42 = scalar_select %p41, 0, %s40
      %s43 = sadd.s32 %s24, %s25
      %s44 = sadd.s32 %s38, %s34
      %s45 = ssub.s32 %s23, %s42
      %s46 = ssub.s32 %s43, %s44
      %s47 = sor.u32 %s45, %s46
      %p48 = scmp.eq.s32.totalorder %s47, 0
      %s50 = sadd.s32 %s49, 1
      %s51 = scalar_select %p48, %s49, %s50
      %p54 = pneg %p48
      %p55 = scmp.eq.s32.totalorder %s16, 1
      %p56 = por %p54, %p55
      %p57 = scmp.ne.s32.totalorder %s49, %s52
      %p58 = scmp.eq.s32.totalorder %s16, 0
      %p59 = por %p57, %p58
      %p60 = scmp.ne.s32.totalorder %s49, %s52
      %p61 = scmp.eq.s32.totalorder %s21, 1
      %p62 = por %p60, %p61
      %p63 = scmp.ne.s32.totalorder %s52, %s53
      %p64 = scmp.eq.s32.totalorder %s21, 0
      %p65 = por %p63, %p64
      %p66 = scmp.ne.s32.totalorder %s52, %s53
      %p67 = scmp.eq.s32.totalorder %s22, 1
      %p68 = por %p66, %p67
      %p70 = scmp.ne.s32.totalorder %s53, %s69
      %p71 = scmp.eq.s32.totalorder %s22, 0
      %p72 = por %p70, %p71
      %s73 = sadd.s32 %s24, %s25
      %s74 = sadd.s32 %s38, %s34
      %s75 = ssub.s32 %s23, %s42
      %s76 = ssub.s32 %s73, %s74
      %s77 = sor.u32 %s75, %s76
      %p78 = scmp.eq.s32.totalorder %s77, 0
      %s80 = sadd.s32 %s79, 1
      %s81 = scalar_select %p78, %s79, %s80
      %p84 = pneg %p78
      %p85 = scmp.eq.s32.totalorder %s16, 1
      %p86 = por %p84, %p85
      %p87 = scmp.ne.s32.totalorder %s79, %s82
      %p88 = scmp.eq.s32.totalorder %s16, 0
      %p89 = por %p87, %p88
      %p90 = scmp.ne.s32.totalorder %s79, %s82
      %p91 = scmp.eq.s32.totalorder %s21, 1
      %p92 = por %p90, %p91
      %p93 = scmp.ne.s32.totalorder %s82, %s83
      %p94 = scmp.eq.s32.totalorder %s21, 0
      %p95 = por %p93, %p94
      %p96 = scmp.ne.s32.totalorder %s82, %s83
      %p97 = scmp.eq.s32.totalorder %s22, 1
      %p98 = por %p96, %p97
      %p100 = scmp.ne.s32.totalorder %s83, %s99
      %p101 = scmp.eq.s32.totalorder %s22, 0
      %p102 = por %p100, %p101
      %s103 = ssub.s32 %s23, %s42
      %s104 = ssub.s32 %s24, %s38
      %s105 = sor.u32 %s103, %s104
      %p106 = scmp.eq.s32.totalorder %s105, 0
      %s108 = sadd.s32 %s107, 1
      %s109 = scalar_select %p106, %s107, %s108
      %p112 = pneg %p106
      %p113 = scmp.eq.s32.totalorder %s16, 1
      %p114 = por %p112, %p113
      %p115 = scmp.ne.s32.totalorder %s107, %s110
      %p116 = scmp.eq.s32.totalorder %s16, 0
      %p117 = por %p115, %p116
      %p118 = scmp.ne.s32.totalorder %s107, %s110
      %p119 = scmp.eq.s32.totalorder %s21, 1
      %p120 = por %p118, %p119
      %p121 = scmp.ne.s32.totalorder %s110, %s111
      %p122 = scmp.eq.s32.totalorder %s21, 0
      %p123 = por %p121, %p122
      %p124 = scmp.ne.s32.totalorder %s110, %s111
      %p125 = scmp.eq.s32.totalorder %s22, 1
      %p126 = por %p124, %p125
      %p128 = scmp.ne.s32.totalorder %s111, %s127
      %p129 = scmp.eq.s32.totalorder %s22, 0
      %p130 = por %p128, %p129
      %s131 = ssub.s32 %s23, %s42
      %s132 = ssub.s32 %s24, %s38
      %s133 = sor.u32 %s131, %s132
      %p134 = scmp.eq.s32.totalorder %s133, 0
      %s136 = sadd.s32 %s135, 1
      %s137 = scalar_select %p134, %s135, %s136
      %p140 = pneg %p134
      %p141 = scmp.eq.s32.totalorder %s16, 1
      %p142 = por %p140, %p141
      %p143 = scmp.ne.s32.totalorder %s135, %s138
      %p144 = scmp.eq.s32.totalorder %s16, 0
      %p145 = por %p143, %p144
      %p146 = scmp.ne.s32.totalorder %s135, %s138
      %p147 = scmp.eq.s32.totalorder %s21, 1
      %p148 = por %p146, %p147
      %p149 = scmp.ne.s32.totalorder %s138, %s139
      %p150 = scmp.eq.s32.totalorder %s21, 0
      %p151 = por %p149, %p150
      %p152 = scmp.ne.s32.totalorder %s138, %s139
      %p153 = scmp.eq.s32.totalorder %s22, 1
      %p154 = por %p152, %p153
      %p156 = scmp.ne.s32.totalorder %s139, %s155
      %p157 = scmp.eq.s32.totalorder %s22, 0
      %p158 = por %p156, %p157
      %p159 = scmp.le.s32.totalorder 1, %s16
      %p160 = scmp.lt.s32.totalorder %s16, 3
      %p161 = pnand %p159, %p160
      %p162 = pneg %p161
      // Predicated region
      $region9: #{tpu_custom_call.1} parent=5 // pred_check
        _
      $region10: #{tpu_custom_call.1} parent=5 // pred_check_branch
        %164 = sbr.rel (%p161) target = $region12
      $region11: #{tpu_custom_call.1} parent=5 // pred_region
        %s165 = ssub.s32 %s16, 1
      $region12: #{tpu_custom_call.1} parent=5 // pred_fallthru
        _
      %p166 = scmp.lt.s32.totalorder %s16, 2
      // Predicated region
      $region13: #{tpu_custom_call.1} parent=5 // pred_check
        %p167 = pneg %p166
      $region14: #{tpu_custom_call.1} parent=5 // pred_check_branch
        %169 = sbr.rel (%p167) target = $region16
      $region15: #{tpu_custom_call.1} parent=5 // pred_region
        // Predicated region
        $region17: #{tpu_custom_call.1} parent=15 // pred_check
          %p170 = pneg %p59
        $region18: #{tpu_custom_call.1} parent=15 // pred_check_branch
          %172 = sbr.rel (%p170) target = $region20
        $region19: #{tpu_custom_call.1} parent=15 // pred_region
          %s173 = sand.u32 %s49, 1
          %s174 = scalar_lea.sflag [#allocation5], %s173
          %s175 = sand.u32 %s49, 1
          %s176 = smul.addr %s175, 8
          %s177 = scalar_lea.vmem [#allocation4], %s176
          %s178 = sadd.s32 %s24, %s25
          %s180 = ssub.s32 128, 128
          %181 = vsyncadd %s174, %s180
          %s182 = smul.addr %s23, 4
          %s183 = sadd.s32 %s178, %s182
          %s184 = smul.addr %s183, 32
          %s185 = scalar_lea.hbm %s0, %s184
          %s186 = sshll.u32 %s177, 4
          %s187 = int_to_ptr.vmem [resolvable:$true] %s186
          %192 = dma.hbm_to_vmem [thread:$0]  %s185, 128, %s187, %s174, 32, 32, 2
        $region20: #{tpu_custom_call.1} parent=15 // pred_fallthru
          _
        // Predicated region
        $region21: #{tpu_custom_call.1} parent=15 // pred_check
          %p193 = pneg %p89
        $region22: #{tpu_custom_call.1} parent=15 // pred_check_branch
          %195 = sbr.rel (%p193) target = $region24
        $region23: #{tpu_custom_call.1} parent=15 // pred_region
          %s196 = sand.u32 %s79, 1
          %s197 = scalar_lea.sflag [#allocation7], %s196
          %s198 = sand.u32 %s79, 1
          %s199 = smul.addr %s198, 2
          %s200 = scalar_lea.vmem [#allocation6], %s199
          %s201 = sadd.s32 %s24, %s25
          %s203 = ssub.s32 32, 32
          %204 = vsyncadd %s197, %s203
          %s205 = sadd.s32 %s201, %s23
          %s206 = smul.addr %s205, 32
          %s207 = scalar_lea.hbm %s1, %s206
          %s209 = sshll.u32 %s200, 4
          %s210 = int_to_ptr.vmem [resolvable:$true] %s209
          %212 = dma.hbm_to_vmem [thread:$0]  %s207, 32, %s210, %s197
        $region24: #{tpu_custom_call.1} parent=15 // pred_fallthru
          _
      $region16: #{tpu_custom_call.1} parent=5 // pred_fallthru
        _
      %p213 = scmp.le.s32.totalorder 1, %s16
      %p214 = scmp.lt.s32.totalorder %s16, 3
      %p215 = pnand %p213, %p214
      %p216 = pneg %p215
      // Predicated region
      $region25: #{tpu_custom_call.1} parent=5 // pred_check
        _
      $region26: #{tpu_custom_call.1} parent=5 // pred_check_branch
        %218 = sbr.rel (%p215) target = $region28
      $region27: #{tpu_custom_call.1} parent=5 // pred_region
        %s219 = ssub.s32 %s16, 1
        %s220 = sand.u32 %s52, 1
        %s221 = scalar_lea.sflag [#allocation5], %s220
        %s222 = sand.u32 %s52, 1
        %s223 = smul.addr %s222, 8
        %s224 = scalar_lea.vmem [#allocation4], %s223
        // Predicated region
        $region29: #{tpu_custom_call.1} parent=27 // pred_check
          %p225 = pneg %p65
        $region30: #{tpu_custom_call.1} parent=27 // pred_check_branch
          %227 = sbr.rel (%p225) target = $region32
        $region31: #{tpu_custom_call.1} parent=27 // pred_region
          %228 = dma.done %s221, 128
        $region32: #{tpu_custom_call.1} parent=27 // pred_fallthru
          _
        %s229 = sand.u32 %s82, 1
        %s230 = scalar_lea.sflag [#allocation7], %s229
        %s231 = sand.u32 %s82, 1
        %s232 = smul.addr %s231, 2
        %s233 = scalar_lea.vmem [#allocation6], %s232
        // Predicated region
        $region33: #{tpu_custom_call.1} parent=27 // pred_check
          %p234 = pneg %p95
        $region34: #{tpu_custom_call.1} parent=27 // pred_check_branch
          %236 = sbr.rel (%p234) target = $region36
        $region35: #{tpu_custom_call.1} parent=27 // pred_region
          %237 = dma.done %s230, 32
        $region36: #{tpu_custom_call.1} parent=27 // pred_fallthru
          _
        %s238 = sand.u32 %s52, 1
        %s239 = scalar_lea.sflag [#allocation5], %s238
        %s240 = sand.u32 %s52, 1
        %s241 = smul.addr %s240, 8
        %s242 = scalar_lea.vmem [#allocation4], %s241
        %p243 = pneg %p65
        %p244 = pneg %p62
        %s245 = sand.u32 %s82, 1
        %s246 = scalar_lea.sflag [#allocation7], %s245
        %s247 = sand.u32 %s82, 1
        %s248 = smul.addr %s247, 2
        %s249 = scalar_lea.vmem [#allocation6], %s248
        %p250 = pneg %p95
        %p251 = pneg %p92
        %p252 = pneg %p123
        %p253 = pneg %p120
        %p254 = scmp.lt.s32.totalorder %s26, 1
        %s255 = scalar_select %p254, %s26, 1
        %p256 = scmp.lt.s32.totalorder %s27, 0
        %s257 = scalar_select %p256, %s27, 0
        %s258 = sadd.s32 %s257, %s255
        %s259 = scalar_lea.vmem %s2, %s258
        %p260 = pneg %p151
        %p261 = pneg %p148
        %p262 = scmp.lt.s32.totalorder %s26, 1
        %s263 = scalar_select %p262, %s26, 1
        %p264 = scmp.lt.s32.totalorder %s27, 0
        %s265 = scalar_select %p264, %s27, 0
        %s266 = sadd.s32 %s265, %s263
        %s267 = scalar_lea.vmem %s3, %s266
        %s268 = sadd.s32 %s27, %s28
        %s269 = sadd.s32 %s27, %s28
        %p270 = scmp.lt.s32.totalorder %s26, 1
        %s271 = scalar_select %p270, %s26, 1
        %p272 = scmp.lt.s32.totalorder %s27, 0
        %s273 = scalar_select %p272, %s27, 0
        %s274 = sadd.s32 %s273, %s271
        %s275 = scalar_lea.vmem %s2, %s274
        %p276 = scmp.lt.s32.totalorder %s26, 1
        %s277 = scalar_select %p276, %s26, 1
        %p278 = scmp.lt.s32.totalorder %s27, 0
        %s279 = scalar_select %p278, %s27, 0
        %s280 = sadd.s32 %s279, %s277
        %s281 = scalar_lea.vmem %s3, %s280
        %p282 = scmp.eq.s32.totalorder %s28, 0
        // Predicated region
        $region37: #{tpu_custom_call.1} parent=27 // pred_check
          %p283 = pneg %p282
        $region38: #{tpu_custom_call.1} parent=27 // pred_check_branch
          %285 = sbr.rel (%p283) target = $region40
        $region39: #{tpu_custom_call.1} parent=27 // pred_region
          %286 = vst [vmem:[#allocation2] sm:$0x3] 0.0
          %287 = vst [vmem:[#allocation3] sm:$0x3] 0.0
        $region40: #{tpu_custom_call.1} parent=27 // pred_fallthru
          _
        %v288 = vld [vmem:[%s224] sm:$0x3]
        %v289 = vld [vmem:[%s224 + $0x2] sm:$0x3]
        %v290 = vld [vmem:[%s224 + $0x4] sm:$0x3]
        %v291 = vld [vmem:[%s224 + $0x6] sm:$0x3]
        %v292 = vld [vmem:[%s233] sm:$0x3]
        %vm293 = vcmask 1041408
        %v294 = vsel %vm293, %v288, -inf
        %v295 = vsel %vm293, %v289, -inf
        %v296 = vsel %vm293, %v290, -inf
        %v297 = vsel %vm293, %v291, -inf
        %v298 = vmax.f32 %v294, %v295
        %v299 = vmax.f32 %v296, %v297
        %v300 = vmax.f32 %v298, %v299
        %v301 = vsub.f32 %v288, %v300
        %v302 = vsub.f32 %v289, %v300
        %v303 = vsub.f32 %v290, %v300
        %v304 = vsub.f32 %v291, %v300
        %v305 = vmul.f32 %v301, 1.442695
        %v306 = vpow.pop %v305
        %v307 = vmul.f32 %v302, 1.442695
        %v308 = vpow.pop %v307
        %v309 = vmul.f32 %v303, 1.442695
        %v310 = vpow.pop %v309
        %v311 = vmul.f32 %v304, 1.442695
        %v312 = vpow.pop %v311
        %v313 = vsel %vm293, %v306, 0.0
        %v314 = vsel %vm293, %v308, 0.0
        %v315 = vadd.f32 %v313, %v314
        %v316 = vsel %vm293, %v310, 0.0
        %v317 = vadd.f32 %v315, %v316
        %v318 = vsel %vm293, %v312, 0.0
        %v319 = vadd.f32 %v317, %v318
        %v320 = vlog2.pop %v319
        %v321 = vmul.f32 %v320, 0.6931472
        %vm322 = vcmp.eq.s32.totalorder %v292, 0
        %vm323 = vcmp.eq.s32.totalorder %v292, 1
        %vm324 = vcmp.eq.s32.totalorder %v292, 2
        %vm325 = vcmp.eq.s32.totalorder %v292, 3
        %v326 = vsel %vm322, %v301, 0.0
        %v327 = vsel %vm323, %v302, 0.0
        %v328 = vsel %vm324, %v303, 0.0
        %v329 = vsel %vm325, %v304, 0.0
        %v330 = vsel %vm293, %v326, 0.0
        %v331 = vsel %vm293, %v327, 0.0
        %v332 = vadd.f32 %v330, %v331
        %v333 = vsel %vm293, %v328, 0.0
        %v334 = vadd.f32 %v332, %v333
        %v335 = vsel %vm293, %v329, 0.0
        %v336 = vadd.f32 %v334, %v335
        %v337 = vsub.f32 %v321, %v336
        %v338 = vlaneseq
        %v339 = vshrl.u32 %v338, 7
        %v340 = vlaneseq
        %v341 = vand.u32 %v340, 127
        %s342 = sadd.s32 %s27, %s28
        %s343 = smul.u32 %s342, 2
        %v344 = vstv %s343
        %v345 = vadd.s32 %v344, %v339
        %v346 = vmul.u32 %v345, 128
        %v347 = vadd.s32 %v346, %v341
        %vm348 = vcmp.ne.s32.totalorder %v292, 255
        %vm349 = vcmp.lt.s32.totalorder %v347, 256
        %vm350 = vmand %vm348, %vm349
        %v351 = vld [vmem:[#allocation2] sm:$0x3]
        %v352 = vsel %vm350, %v337, 0.0
        %v353 = vadd.f32 %v351, %v352
        %354 = vst [vmem:[#allocation2] sm:$0x3] %v353
        %v355 = vld [vmem:[#allocation3] sm:$0x3]
        %v356 = vsel %vm350, 1, 0
        %v357 = vcvt.s32.f32 %v356
        %v358 = vadd.f32 %v355, %v357
        %359 = vst [vmem:[#allocation3] sm:$0x3] %v358
        // Predicated region
        $region41: #{tpu_custom_call.1} parent=27 // pred_check
          %p360 = pneg %p282
        $region42: #{tpu_custom_call.1} parent=27 // pred_check_branch
          %362 = sbr.rel (%p360) target = $region44
        $region43: #{tpu_custom_call.1} parent=27 // pred_region
          %v363 = vld [vmem:[#allocation2] sm:$0x3]
          %v364 = vsel %vm293, %v363, 0.0
          %365 = vadd.xlane.f32.xlu0 %v364
          %v366 = vpop.xlane.xlu0 %365
          %v367 = vrot.slane %v366, 4
          %v368 = vadd.f32 %v366, %v367
          %v369 = vrot.slane %v368, 2
          %v370 = vadd.f32 %v368, %v369
          %v371 = vrot.slane %v370, 1
          %v372 = vadd.f32 %v370, %v371
          %s373 = vtos %v372
          %v374 = vstv %s373
          %vm375 = vcmask 0
          %376 = vst.msk [vmem:[%s275] sm:$0x1] %vm375, %v374
          %v377 = vld [vmem:[#allocation3] sm:$0x3]
          %v378 = vsel %vm293, %v377, 0.0
          %379 = vadd.xlane.f32.xlu0 %v378
          %v380 = vpop.xlane.xlu0 %379
          %v381 = vrot.slane %v380, 4
          %v382 = vadd.f32 %v380, %v381
          %v383 = vrot.slane %v382, 2
          %v384 = vadd.f32 %v382, %v383
          %v385 = vrot.slane %v384, 1
          %v386 = vadd.f32 %v384, %v385
          %s387 = vtos %v386
          %v388 = vstv %s387
          %389 = vst.msk [vmem:[%s281] sm:$0x1] %vm375, %v388
        $region44: #{tpu_custom_call.1} parent=27 // pred_fallthru
          _
        %p390 = scmp.lt.s32.totalorder %s26, 1
        %s391 = scalar_select %p390, %s26, 1
        %p392 = scmp.lt.s32.totalorder %s27, 0
        %s393 = scalar_select %p392, %s27, 0
        %s394 = sadd.s32 %s393, %s391
        %s395 = scalar_lea.vmem %s2, %s394
        %p396 = scmp.lt.s32.totalorder %s26, 1
        %s397 = scalar_select %p396, %s26, 1
        %p398 = scmp.lt.s32.totalorder %s27, 0
        %s399 = scalar_select %p398, %s27, 0
        %s400 = sadd.s32 %s399, %s397
        %s401 = scalar_lea.vmem %s3, %s400
        // Predicated region
        $region45: #{tpu_custom_call.1} parent=27 // pred_check
          %p402 = pneg %p120
        $region46: #{tpu_custom_call.1} parent=27 // pred_check_branch
          %404 = sbr.rel (%p402) target = $region48
        $region47: #{tpu_custom_call.1} parent=27 // pred_region
          _
        $region48: #{tpu_custom_call.1} parent=27 // pred_fallthru
          _
        // Predicated region
        $region49: #{tpu_custom_call.1} parent=27 // pred_check
          %p405 = pneg %p148
        $region50: #{tpu_custom_call.1} parent=27 // pred_check_branch
          %407 = sbr.rel (%p405) target = $region52
        $region51: #{tpu_custom_call.1} parent=27 // pred_region
          _
        $region52: #{tpu_custom_call.1} parent=27 // pred_fallthru
          _
      $region28: #{tpu_custom_call.1} parent=5 // pred_fallthru
        _
      %p408 = scmp.le.s32.totalorder 2, %s16
      // Predicated region
      $region53: #{tpu_custom_call.1} parent=5 // pred_check
        %p409 = pneg %p408
      $region54: #{tpu_custom_call.1} parent=5 // pred_check_branch
        %411 = sbr.rel (%p409) target = $region56
      $region55: #{tpu_custom_call.1} parent=5 // pred_region
        %s412 = ssub.s32 %s16, 2
        // Predicated region
        $region57: #{tpu_custom_call.1} parent=55 // pred_check
          %p413 = pneg %p126
        $region58: #{tpu_custom_call.1} parent=55 // pred_check_branch
          %415 = sbr.rel (%p413) target = $region60
        $region59: #{tpu_custom_call.1} parent=55 // pred_region
          %p416 = scmp.lt.s32.totalorder %s29, 1
          %s417 = scalar_select %p416, %s29, 1
          %p418 = scmp.lt.s32.totalorder %s30, 0
          %s419 = scalar_select %p418, %s30, 0
          %s420 = sadd.s32 %s419, %s417
          %s421 = scalar_lea.vmem %s2, %s420
        $region60: #{tpu_custom_call.1} parent=55 // pred_fallthru
          _
        // Predicated region
        $region61: #{tpu_custom_call.1} parent=55 // pred_check
          %p422 = pneg %p154
        $region62: #{tpu_custom_call.1} parent=55 // pred_check_branch
          %424 = sbr.rel (%p422) target = $region64
        $region63: #{tpu_custom_call.1} parent=55 // pred_region
          %p425 = scmp.lt.s32.totalorder %s29, 1
          %s426 = scalar_select %p425, %s29, 1
          %p427 = scmp.lt.s32.totalorder %s30, 0
          %s428 = scalar_select %p427, %s30, 0
          %s429 = sadd.s32 %s428, %s426
          %s430 = scalar_lea.vmem %s3, %s429
        $region64: #{tpu_custom_call.1} parent=55 // pred_fallthru
          _
      $region56: #{tpu_custom_call.1} parent=5 // pred_fallthru
        _
    $region6: #{tpu_custom_call.1} parent=1 // loop_footer
      %s20 = sadd.s32 1, %s16
    $region7: #{tpu_custom_call.1} parent=1 // loop_footer_branch
      %15 = sbr.rel target = $region3
    $region8: #{tpu_custom_call.1} parent=1 // loop_exit
      _
    %431 = vsyncpa [#allocation5], 1
    %s432 = scalar_lea.sflag [#allocation5], 1
    %433 = vsyncpa %s432, 1
    %434 = vsyncpa [#allocation7], 1
    %s435 = scalar_lea.sflag [#allocation7], 1
    %436 = vsyncpa %s435, 1

</llo_original>
